<compile_context>
chip_gen: v6e
topology: v6e:2x2x1
jax: 0.10.0
libtpu: 0.0.40
codegen_flags: <defaults>
</compile_context>

<pallas_src>
import functools
import math

import jax
import jax.numpy as jnp
from jax.experimental import pallas as pl
from jax.experimental.pallas import tpu as pltpu


def _round_up(x: int, m: int) -> int:
    return -(-x // m) * m


def _pos_enc_kernel(idx_ref, emb_ref, pe_ref, out_ref, *, scale, batch, e_pad):
    """One grid step = one sequence tile (all batch elements).

    idx_ref: (ts, B)        int32  token ids for this sequence tile
    emb_ref: (V_pad, E_pad) bf16   full embedding table (VMEM-resident, constant block)
    pe_ref:  (ts, E_pad)    f32    positional-encoding rows for this tile
    out_ref: (ts, B*E_pad)  f32    lane-dense output; batch b occupies lanes
                                   [b*E_pad, (b+1)*E_pad)
    """
    ts = idx_ref.shape[0]
    v_pad = emb_ref.shape[0]

    table = emb_ref[...]                                         # (V_pad, E_pad) bf16
    pe = pe_ref[...]                                             # (ts, E_pad) f32
    # Hoisted out of the batch loop (JAX does not CSE broadcast_in_dim).
    iota = jax.lax.broadcasted_iota(jnp.int32, (ts, v_pad), 1)   # (ts, V_pad)

    # TODO(synk): for large batch, put `b` on the grid instead of unrolling.
    for b in range(batch):
        ids_b = idx_ref[:, b:b + 1]                              # (ts, 1) int32
        # One-hot built directly in bf16 (exact 0/1); no scale folded in.
        # NOTE: ids outside [0, V) yield an all-zero row (nn.Embedding would raise).
        onehot = (ids_b == iota).astype(jnp.bfloat16)            # (ts, V_pad)
        emb_b = jnp.dot(onehot, table,
                        preferred_element_type=jnp.float32)      # (ts, E_pad) f32
        # sqrt(E) applied once, in f32; aligned unmasked 128-lane store.
        out_ref[:, b * e_pad:(b + 1) * e_pad] = emb_b * scale + pe

    # TODO(synk): nn.Dropout is stochastic/train-only; forward here == eval mode.


def prepare_params(emb_weight, pe_full):
    """One-time layout preparation (hoisted out of the forward per review).

    emb_weight: (V, E) f32;  pe_full: (max_len, 1, E) f32
    Returns (emb_prep (V_pad, E_pad) bf16, pe_prep (max_len, E_pad) f32).
    """
    V, E = emb_weight.shape
    E_pad = _round_up(E, 128)                    # lane-dense last dim
    V_pad = _round_up(V, 16)                     # bf16 sublane-packing alignment
    emb_prep = jnp.pad(emb_weight, ((0, V_pad - V), (0, E_pad - E))).astype(jnp.bfloat16)
    pe_prep = jnp.pad(pe_full[:, 0, :], ((0, 0), (0, E_pad - E)))  # (max_len, E_pad) f32
    return emb_prep, pe_prep


def positional_encoding_forward(x_idx, emb_prep, pe_prep, scale, embedding_dim,
                                *, seq_tile=512):
    """x_idx: (S, B) int32.  Returns (S, B, E) f32 = emb[x] * scale + pe[:S]."""
    S, B = x_idx.shape
    V_pad, E_pad = emb_prep.shape
    max_len = pe_prep.shape[0]
    if S > max_len:
        raise ValueError(f"sequence length {S} exceeds pe max_len {max_len}")

    # ---- tile sizing under a VMEM budget safe for v5e/v6e (128 MiB) and v7x (64 MiB/TC)
    ts = min(seq_tile, _round_up(S, 8))          # sequence tile (multiple of 8)

    def _vmem_needed(ts_):
        return (2 * V_pad * E_pad * 2            # resident bf16 table (conservatively x2)
                + 2 * ts_ * B * 4                # ids double-buffer
                + 2 * ts_ * E_pad * 4            # pe double-buffer
                + 2 * ts_ * B * E_pad * 4)       # out double-buffer

    _VMEM_BUDGET = 48 * 1024 * 1024
    while ts > 8 and _vmem_needed(ts) > _VMEM_BUDGET:
        ts = max(8, _round_up(ts // 2, 8))
    if _vmem_needed(ts) > _VMEM_BUDGET:
        # TODO(synk): scalar-prefetch ids (SMEM) + DMA row-gather from HBM for big vocab.
        raise NotImplementedError("embedding table too large for VMEM-resident path")

    S_pad = _round_up(S, ts)
    n_si = S_pad // ts

    # ---- cheap per-call layout plumbing (ids only; table/pe already prepared) ----
    idx2d = x_idx.astype(jnp.int32)
    if S_pad != S:
        idx2d = jnp.pad(idx2d, ((0, S_pad - S), (0, 0)))         # padded rows: token 0
    pe_in = pe_prep
    if S_pad > max_len:                                          # rare alignment edge case
        pe_in = jnp.pad(pe_prep, ((0, S_pad - max_len), (0, 0)))

    kernel = functools.partial(_pos_enc_kernel, scale=float(scale), batch=B, e_pad=E_pad)

    bytes_accessed = (idx2d.size * 4 + emb_prep.size * 2
                      + S_pad * E_pad * 4 + S_pad * B * E_pad * 4)
    vmem_limit = min(64 * 1024 * 1024,
                     max(32 * 1024 * 1024, _vmem_needed(ts) + 4 * 1024 * 1024))

    out_flat = pl.pallas_call(
        kernel,
        out_shape=jax.ShapeDtypeStruct((S_pad, B * E_pad), jnp.float32),
        grid_spec=pltpu.PrefetchScalarGridSpec(
            num_scalar_prefetch=0,
            grid=(n_si,),
            in_specs=[
                pl.BlockSpec((ts, B), lambda si: (si, 0)),            # token ids
                pl.BlockSpec((V_pad, E_pad), lambda si: (0, 0)),      # table: constant -> resident
                pl.BlockSpec((ts, E_pad), lambda si: (si, 0)),        # pe: streamed once
            ],
            out_specs=pl.BlockSpec((ts, B * E_pad), lambda si: (si, 0)),
        ),
        compiler_params=pltpu.CompilerParams(
            dimension_semantics=("parallel",),
            vmem_limit_bytes=vmem_limit,
        ),
        cost_estimate=pl.CostEstimate(flops=0, transcendentals=0,
                                      bytes_accessed=bytes_accessed),
    )(idx2d, emb_prep, pe_in)

    out = out_flat.reshape(S_pad, B, E_pad)      # free row-major reshape (no transpose)
    if S_pad != S or E_pad != embedding_dim:
        out = out[:S, :, :embedding_dim]
    return out


def make_params(inputs_dim, embedding_dim, max_len, key):
    """Deterministic parameter / buffer construction matching __init__."""
    emb_weight = jax.random.uniform(
        key, (inputs_dim, embedding_dim), jnp.float32, minval=-0.1, maxval=0.1)

    position = jnp.arange(max_len, dtype=jnp.float32)[:, None]           # (max_len, 1)
    div_term = jnp.exp(
        jnp.arange(0, embedding_dim, 2, dtype=jnp.float32)
        * (-math.log(10000.0) / embedding_dim))                          # (E//2,)
    pe = jnp.zeros((max_len, 1, embedding_dim), jnp.float32)
    pe = pe.at[:, 0, 0::2].set(jnp.sin(position * div_term))
    pe = pe.at[:, 0, 1::2].set(jnp.cos(position * div_term))
    return emb_weight, pe


if __name__ == "__main__":
    # Small, deterministic example shapes.
    inputs_dim = 16        # vocab size V
    embedding_dim = 32     # E
    max_len = 64
    S, B = 8, 2            # sequence length, batch
    dropout_p = 0.1        # unused at eval time

    key = jax.random.PRNGKey(0)
    k_emb, k_idx = jax.random.split(key)

    emb_weight, pe = make_params(inputs_dim, embedding_dim, max_len, k_emb)
    scale = math.sqrt(embedding_dim)
    x_idx = jax.random.randint(k_idx, (S, B), 0, inputs_dim, dtype=jnp.int32)

    # One-time parameter preparation (pad + bf16 cast), then the forward pass.
    emb_prep, pe_prep = prepare_params(emb_weight, pe)
    out = positional_encoding_forward(x_idx, emb_prep, pe_prep, scale, embedding_dim)
    out = jax.block_until_ready(out)
    assert out.shape == (S, B, embedding_dim)

    # Tight check vs. a reference using the same bf16-rounded table (scale/pe/add in f32).
    w_bf16 = emb_weight.astype(jnp.bfloat16).astype(jnp.float32)
    ref = w_bf16[x_idx] * scale + pe[:S]
    assert jnp.allclose(out, ref, atol=1e-5, rtol=1e-5)

    # Loose sanity check vs. the pure-f32 reference (bf16 table rounding only).
    ref_f32 = emb_weight[x_idx] * scale + pe[:S]
    assert jnp.allclose(out, ref_f32, atol=2e-2, rtol=2e-2)

    print("KERNEL_OK")
</pallas_src>

<mosaic_0001>
module attributes {stable_mosaic.version = 11 : i64} {
  func.func @_pos_enc_kernel(%arg0: i32, %arg1: memref<8x2xi32, #tpu.memory_space<vmem>>, %arg2: memref<16x128xbf16, #tpu.memory_space<vmem>>, %arg3: memref<8x128xf32, #tpu.memory_space<vmem>>, %arg4: memref<8x256xf32, #tpu.memory_space<vmem>>) attributes {dimension_semantics = [#tpu.dimension_semantics<parallel>], iteration_bounds = array<i64: 1>, scalar_prefetch = 0 : i64, scratch_operands = 0 : i64, tpu.core_type = #tpu.core_type<tc>, window_params = [{transform_indices = @transform_0, window_bounds = array<i64: 8, 2>}, {pipeline_mode = #tpu.pipeline_mode<synchronous>, transform_indices = @transform_1, window_bounds = array<i64: 16, 128>}, {transform_indices = @transform_2, window_bounds = array<i64: 8, 128>}, {transform_indices = @transform_3, window_bounds = array<i64: 8, 256>}]} {
    %c0 = arith.constant 0 : index
    %c0_0 = arith.constant 0 : index
    %0 = vector.load %arg2[%c0, %c0_0] : memref<16x128xbf16, #tpu.memory_space<vmem>>, vector<16x128xbf16>
    %c0_1 = arith.constant 0 : index
    %c0_2 = arith.constant 0 : index
    %1 = vector.load %arg3[%c0_1, %c0_2] : memref<8x128xf32, #tpu.memory_space<vmem>>, vector<8x128xf32>
    %2 = tpu.iota {dimensions = array<i32: 1>} : vector<8x16xi32>
    %c0_3 = arith.constant 0 : index
    %c0_4 = arith.constant 0 : index
    %3 = vector.load %arg1[%c0_3, %c0_4] : memref<8x2xi32, #tpu.memory_space<vmem>>, vector<8x1xi32>
    %4 = vector.broadcast %3 : vector<8x1xi32> to vector<8x16xi32>
    %5 = arith.cmpi eq, %4, %2 : vector<8x16xi32>
    %6 = arith.extui %5 : vector<8x16xi1> to vector<8x16xi32>
    %7 = arith.sitofp %6 : vector<8x16xi32> to vector<8x16xf32>
    %8 = arith.truncf %7 : vector<8x16xf32> to vector<8x16xbf16>
    %cst = arith.constant dense<0.000000e+00> : vector<8x128xf32>
    %9 = tpu.matmul %8, %0, %cst {dimension_numbers = #tpu.dot_dimension_numbers<[1], [0], [0], [1], [0, 0, 1, 1], [], []>} : vector<8x16xbf16>, vector<16x128xbf16>, vector<8x128xf32> -> vector<8x128xf32>
    %cst_5 = arith.constant 5.65685415 : f32
    %10 = vector.broadcast %cst_5 : f32 to vector<8x128xf32>
    %11 = arith.mulf %9, %10 : vector<8x128xf32>
    %12 = arith.addf %11, %1 : vector<8x128xf32>
    %c0_6 = arith.constant 0 : index
    %c0_7 = arith.constant 0 : index
    %13 = vector.load %arg4[%c0_6, %c0_7] : memref<8x256xf32, #tpu.memory_space<vmem>>, vector<8x128xf32>
    tpu.vector_store %arg4[%c0_6, %c0_7], %12 {strides = array<i32>} : memref<8x256xf32, #tpu.memory_space<vmem>>, vector<8x128xf32>,
    %c0_8 = arith.constant 0 : index
    %c1 = arith.constant 1 : index
    %14 = vector.load %arg1[%c0_8, %c1] : memref<8x2xi32, #tpu.memory_space<vmem>>, vector<8x1xi32>
    %15 = vector.broadcast %14 : vector<8x1xi32> to vector<8x16xi32>
    %16 = arith.cmpi eq, %15, %2 : vector<8x16xi32>
    %17 = arith.extui %16 : vector<8x16xi1> to vector<8x16xi32>
    %18 = arith.sitofp %17 : vector<8x16xi32> to vector<8x16xf32>
    %19 = arith.truncf %18 : vector<8x16xf32> to vector<8x16xbf16>
    %cst_9 = arith.constant dense<0.000000e+00> : vector<8x128xf32>
    %20 = tpu.matmul %19, %0, %cst_9 {dimension_numbers = #tpu.dot_dimension_numbers<[1], [0], [0], [1], [0, 0, 1, 1], [], []>} : vector<8x16xbf16>, vector<16x128xbf16>, vector<8x128xf32> -> vector<8x128xf32>
    %cst_10 = arith.constant 5.65685415 : f32
    %21 = vector.broadcast %cst_10 : f32 to vector<8x128xf32>
    %22 = arith.mulf %20, %21 : vector<8x128xf32>
    %23 = arith.addf %22, %1 : vector<8x128xf32>
    %c0_11 = arith.constant 0 : index
    %c128 = arith.constant 128 : index
    %24 = vector.load %arg4[%c0_11, %c128] : memref<8x256xf32, #tpu.memory_space<vmem>>, vector<8x128xf32>
    tpu.vector_store %arg4[%c0_11, %c128], %23 {strides = array<i32>} : memref<8x256xf32, #tpu.memory_space<vmem>>, vector<8x128xf32>,
    return
  }
  func.func @transform_0(%arg0: i32) -> (i32, i32) {
    %c0_i32 = arith.constant 0 : i32
    %c0_i32_0 = arith.constant 0 : i32
    return %arg0, %c0_i32 : i32, i32
  }
  func.func @transform_1(%arg0: i32) -> (i32, i32) {
    %c0_i32 = arith.constant 0 : i32
    %c0_i32_0 = arith.constant 0 : i32
    %c0_i32_1 = arith.constant 0 : i32
    return %c0_i32, %c0_i32_0 : i32, i32
  }
  func.func @transform_2(%arg0: i32) -> (i32, i32) {
    %c0_i32 = arith.constant 0 : i32
    %c0_i32_0 = arith.constant 0 : i32
    return %arg0, %c0_i32 : i32, i32
  }
  func.func @transform_3(%arg0: i32) -> (i32, i32) {
    %c0_i32 = arith.constant 0 : i32
    %c0_i32_0 = arith.constant 0 : i32
    return %arg0, %c0_i32 : i32, i32
  }
}

</mosaic_0001>

<llo_original>
// kernel: tpu_custom_call.1
$region0: #{tpu_custom_call.1}
  #allocation0 [shape = 'u32[]', space=smem, size = 0x4, offset = 0x4, fixed_abs, tag = 'smem constant byte address 0x4 - core index']
  #allocation1 [shape = 'u32[144,128]{1,0:T(1,128)}', space=vmem, size = 0x12000, scoped, tag = 'internal scratch']
  %s0 = inlined_call_operand.vmem [shape: s32[8,2], index: 0, kind: input, shape index: {}]
  %s1 = inlined_call_operand.vmem [shape: bf16[16,128], index: 1, kind: input, shape index: {}]
  %s2 = inlined_call_operand.hbm [shape: f32[64,128], index: 2, kind: input, shape index: {}]
  %s3 = inlined_call_operand.hbm [shape: f32[8,256], index: 3, kind: output, shape index: {}]
  %s4 = sld [smem:[#allocation0]]
  $region26: #{tpu_custom_call.1} parent=0
    _
  %s6 = ssub.s32 1, %s4
  %s7 = scalar_select 0, %s6, %s4
  $region1: #{tpu_custom_call.1} parent=0
    #allocation2 [shape = 'u8[4096]{0}', space=vmem, size = 0x1000, scoped, tag = 'input window, operand 2, single buffered']
    #allocation3 [shape = 's32[1]{0}', space=sflag, size = 0x4, scoped, tag = 'scoped memory for tpu_custom_call.1']
    #allocation4 [shape = 's32[1]{0}', space=sflag, size = 0x4, scoped, tag = 'scoped memory for tpu_custom_call.1']
    #allocation5 [shape = 'u8[8192]{0}', space=vmem, size = 0x2000, scoped, tag = 'output window, operand 0, single buffered']
    %8 = vsyncpa [#allocation3], 0
    %9 = vsyncpa [#allocation4], 0
    // Predicated region
    $region2: #{tpu_custom_call.1} parent=1 // pred_check
      _
    $region3: #{tpu_custom_call.1} parent=1 // pred_check_branch
      %11 = sbr.rel (0) target = $region5
    $region4: #{tpu_custom_call.1} parent=1 // pred_region
      _
    $region5: #{tpu_custom_call.1} parent=1 // pred_fallthru
      _
    // Predicated region
    $region6: #{tpu_custom_call.1} parent=1 // pred_check
      _
    $region7: #{tpu_custom_call.1} parent=1 // pred_check_branch
      %13 = sbr.rel (0) target = $region9
    $region8: #{tpu_custom_call.1} parent=1 // pred_region
      _
    $region9: #{tpu_custom_call.1} parent=1 // pred_fallthru
      _
    // Predicated region
    $region10: #{tpu_custom_call.1} parent=1 // pred_check
      _
    $region11: #{tpu_custom_call.1} parent=1 // pred_check_branch
      %15 = sbr.rel (0) target = $region13
    $region12: #{tpu_custom_call.1} parent=1 // pred_region
      %s17 = ssub.s32 128, 128
      %18 = vsyncadd [#allocation3], %s17
      %s20 = sshll.u32 [#allocation2], 4
      %s21 = int_to_ptr.vmem [resolvable:$true] %s20
      %23 = dma.hbm_to_vmem [thread:$0]  %s2, 128, %s21, [#allocation3]
    $region13: #{tpu_custom_call.1} parent=1 // pred_fallthru
      _
    // Predicated region
    $region14: #{tpu_custom_call.1} parent=1 // pred_check
      _
    $region15: #{tpu_custom_call.1} parent=1 // pred_check_branch
      %25 = sbr.rel (0) target = $region17
    $region16: #{tpu_custom_call.1} parent=1 // pred_region
      %26 = dma.done [#allocation3], 128
    $region17: #{tpu_custom_call.1} parent=1 // pred_fallthru
      _
    %v28 = vld [vmem:[%s1] sm:$0xf]
    %v29 = vld [vmem:[%s1 + $0x4] sm:$0xf]
    %v30 = vld [vmem:[#allocation2] sm:$0xff]
    %v31 = vlaneseq
    %v32 = vand.u32 %v31, 127
    %v33 = vld [vmem:[%s0] sm:$0xff]
    %34 = vset.pattern.permute.xlu0 0
    %35 = vperm.xlu0 %34, %v33
    %v36 = vpop.permute.xlu0 %35
    %vm37 = vcmp.eq.s32.totalorder %v36, %v32
    %v38 = vsel %vm37, 1, 0
    %v39 = vcvt.s32.f32 %v38
    %v40 = vpack.c.bf16 %v39, %v39
    %v43 = vunpack.c.l.b16 %v28
    %v44 = vunpack.c.l.b16 %v29
    %v45 = vpack.c.b16 %v44, %v43
    %vm47 = vcmask 130048
    %v49 = vsel %vm47, %v40, 0
    %51 = vmatprep.subr.bf16.mxu0 0
    %52 = vmatpush1.bf16.msra.mxu0 0
    %53 = vmatprep.subr.bf16.mxu0 0
    %54 = vmatpush1.bf16.msra.mxu0 0
    %55 = vmatprep.subr.bf16.mxu0 0
    %56 = vmatpush1.bf16.msra.mxu0 0
    %57 = vmatprep.subr.bf16.mxu0 0
    %58 = vmatpush1.bf16.msra.mxu0 0
    %59 = vmatprep.subr.bf16.mxu0 0
    %60 = vmatpush1.bf16.msra.mxu0 0
    %61 = vmatprep.subr.bf16.mxu0 0
    %62 = vmatpush1.bf16.msra.mxu0 0
    %63 = vmatprep.subr.bf16.mxu0 0
    %64 = vmatpush1.bf16.msra.mxu0 0
    %65 = vmatprep.subr.bf16.mxu0 0
    %66 = vmatpush1.bf16.msra.mxu0 %v45
    %67 = vmatprep.subr.bf16.mxu0 0
    %68 = vmatpush2.bf16.msra.mxu0 0
    %69 = vmatprep.subr.bf16.mxu0 0
    %70 = vmatpush2.bf16.msra.mxu0 0
    %71 = vmatprep.subr.bf16.mxu0 0
    %72 = vmatpush2.bf16.msra.mxu0 0
    %73 = vmatprep.subr.bf16.mxu0 0
    %74 = vmatpush2.bf16.msra.mxu0 0
    %75 = vmatprep.subr.bf16.mxu0 0
    %76 = vmatpush2.bf16.msra.mxu0 0
    %77 = vmatprep.subr.bf16.mxu0 0
    %78 = vmatpush2.bf16.msra.mxu0 0
    %79 = vmatprep.subr.bf16.mxu0 0
    %80 = vmatpush2.bf16.msra.mxu0 0
    %81 = vmatprep.subr.bf16.mxu0 0
    %82 = vmatpush2.bf16.msra.mxu0 0
    %83 = vmatprep.mubr.bf16.mxu0 0
    %84 = vmatmul.mubr.bf16.gmra.mxu0 %v49
    %v85 = vpop.f32.mrf.mxu0
    %v86 = vadd.f32 0.0, %v85
    %v87 = vpop.f32.mrf.mxu0
    %v88 = vpop.f32.mrf.mxu0
    %v89 = vpop.f32.mrf.mxu0
    %90 = vdwg.mxu0
    %v91 = vmul.f32 %v86, 5.656854
    %v92 = vadd.f32 %v91, %v30
    %93 = vst [vmem:[#allocation5] sm:$0xff] %v92
    %v94 = vld [vmem:[%s0] sm:$0xff]
    %95 = vset.pattern.permute.xlu0 1
    %96 = vperm.xlu0 %95, %v94
    %v97 = vpop.permute.xlu0 %96
    %vm98 = vcmp.eq.s32.totalorder %v97, %v32
    %v99 = vsel %vm98, 1, 0
    %v100 = vcvt.s32.f32 %v99
    %v101 = vpack.c.bf16 %v100, %v100
    %v103 = vsel %vm47, %v101, 0
    %105 = vmatprep.subr.bf16.mxu0 0
    %106 = vmatpush1.bf16.msra.mxu0 0
    %107 = vmatprep.subr.bf16.mxu0 0
    %108 = vmatpush1.bf16.msra.mxu0 0
    %109 = vmatprep.subr.bf16.mxu0 0
    %110 = vmatpush1.bf16.msra.mxu0 0
    %111 = vmatprep.subr.bf16.mxu0 0
    %112 = vmatpush1.bf16.msra.mxu0 0
    %113 = vmatprep.subr.bf16.mxu0 0
    %114 = vmatpush1.bf16.msra.mxu0 0
    %115 = vmatprep.subr.bf16.mxu0 0
    %116 = vmatpush1.bf16.msra.mxu0 0
    %117 = vmatprep.subr.bf16.mxu0 0
    %118 = vmatpush1.bf16.msra.mxu0 0
    %119 = vmatprep.subr.bf16.mxu0 0
    %120 = vmatpush1.bf16.msra.mxu0 %v45
    %121 = vmatprep.subr.bf16.mxu0 0
    %122 = vmatpush2.bf16.msra.mxu0 0
    %123 = vmatprep.subr.bf16.mxu0 0
    %124 = vmatpush2.bf16.msra.mxu0 0
    %125 = vmatprep.subr.bf16.mxu0 0
    %126 = vmatpush2.bf16.msra.mxu0 0
    %127 = vmatprep.subr.bf16.mxu0 0
    %128 = vmatpush2.bf16.msra.mxu0 0
    %129 = vmatprep.subr.bf16.mxu0 0
    %130 = vmatpush2.bf16.msra.mxu0 0
    %131 = vmatprep.subr.bf16.mxu0 0
    %132 = vmatpush2.bf16.msra.mxu0 0
    %133 = vmatprep.subr.bf16.mxu0 0
    %134 = vmatpush2.bf16.msra.mxu0 0
    %135 = vmatprep.subr.bf16.mxu0 0
    %136 = vmatpush2.bf16.msra.mxu0 0
    %137 = vmatprep.mubr.bf16.mxu0 0
    %138 = vmatmul.mubr.bf16.gmra.mxu0 %v103
    %v139 = vpop.f32.mrf.mxu0
    %v140 = vadd.f32 0.0, %v139
    %v141 = vpop.f32.mrf.mxu0
    %v142 = vpop.f32.mrf.mxu0
    %v143 = vpop.f32.mrf.mxu0
    %144 = vdwg.mxu0
    %v145 = vmul.f32 %v140, 5.656854
    %v146 = vadd.f32 %v145, %v30
    %147 = vst [vmem:[#allocation5 + $0x8] sm:$0xff] %v146
    // Predicated region
    $region18: #{tpu_custom_call.1} parent=1 // pred_check
      _
    $region19: #{tpu_custom_call.1} parent=1 // pred_check_branch
      %149 = sbr.rel (0) target = $region21
    $region20: #{tpu_custom_call.1} parent=1 // pred_region
      %s151 = ssub.s32 256, 256
      %152 = vsyncadd [#allocation4], %s151
      %s154 = sshll.u32 [#allocation5], 4
      %s155 = int_to_ptr.vmem [resolvable:$true] %s154
      %157 = dma.vmem_to_hbm [thread:$0]  %s155, 256, %s3, [#allocation4]
    $region21: #{tpu_custom_call.1} parent=1 // pred_fallthru
      _
    // Predicated region
    $region22: #{tpu_custom_call.1} parent=1 // pred_check
      _
    $region23: #{tpu_custom_call.1} parent=1 // pred_check_branch
      %159 = sbr.rel (0) target = $region25
    $region24: #{tpu_custom_call.1} parent=1 // pred_region
      %160 = dma.done [#allocation4], 256
    $region25: #{tpu_custom_call.1} parent=1 // pred_fallthru
      _
    %161 = vsyncpa [#allocation3], 1
    %162 = vsyncpa [#allocation4], 1

</llo_original>
